<compile_context>
chip_gen: v5e
topology: v5e:2x2
jax: 0.10.0
libtpu: 0.0.40
codegen_flags: <defaults>
</compile_context>

<pallas_src>
import functools

import jax
import jax.numpy as jnp
from jax.experimental import pallas as pl
from jax.experimental.pallas import tpu as pltpu


# ----------------------------------------------------------------------------
# Pallas kernel: per-corner bilinear combine + conv-as-matmul accumulation.
# ----------------------------------------------------------------------------
def _deform_conv_kernel(xq_ref, g_ref, w_ref, e_ref, o_ref):
    """xq_ref: (4, K, tm) bf16  gathered corner samples, k = c*N + n, m on lanes
       g_ref : (4, N, tm) bf16  bilinear weights (not tiled over channels)
       w_ref : (OUTC, K)  bf16  conv weight, k = c*N + n
       e_ref : (K, N)     bf16  one-hot expansion matrix E[k, n] = (n == k % N)
       o_ref : (OUTC, tm) f32   lane-dense output tile
    """
    w = w_ref[...]
    e = e_ref[...]

    def corner(r):
        # Broadcast g from N rows to K = C*N rows with a tiny one-hot matmul
        # (exact selection; keeps the broadcast off the VPU critical path and
        # avoids an unsupported ragged sublane tile/reshape).
        g_k = jnp.dot(e, g_ref[r], preferred_element_type=jnp.float32)   # (K, tm)
        x_r = g_k.astype(jnp.bfloat16) * xq_ref[r]                       # bf16 combine
        return jnp.dot(w, x_r, preferred_element_type=jnp.float32)       # (OUTC, tm)

    acc = corner(0)                 # seed accumulator from corner 0 (no zero fill)
    for r in range(1, 4):           # static unroll over the remaining corners
        acc = acc + corner(r)
    o_ref[...] = acc.astype(o_ref.dtype)


# ----------------------------------------------------------------------------
# Tile-size / grid heuristics (generation aware).
# ----------------------------------------------------------------------------
def _num_tensorcores_per_chip():
    """2 TensorCores per chip on v7x, 1 on v5e/v6e.  Best-effort detection."""
    try:
        kind = jax.devices()[0].device_kind.lower()
    except Exception:  # pragma: no cover - defensive
        return 1
    return 2 if ("v7" in kind or "7x" in kind) else 1


def _pick_tm(m_rows, k_cols, n_cols, outc, ncores):
    """Pick the widest lane tile whose double-buffered per-step streams stay
    well inside scoped VMEM.  Multi-TC chips (v7x) additionally want >=2 grid
    steps per TensorCore so the pipeline can prefetch; single-TC chips just
    take the largest tile (fewer steps == less fixed per-step overhead)."""
    budget = 36 * 1024 * 1024  # headroom under the 48 MiB scoped-VMEM request

    def per_step_bytes(t):
        # xq (bf16) + g (bf16), double-buffered, + f32 output (double-buffered)
        return 2 * (4 * k_cols * t * 2 + 4 * n_cols * t * 2) + 2 * outc * t * 4

    cands = (2048, 1024, 512, 256, 128)
    min_steps = 2 * ncores if ncores > 1 else 1
    for t in cands:
        if per_step_bytes(t) <= budget and m_rows >= min_steps * t:
            return t
    for t in cands:  # M too small for the step requirement: largest covering tile
        if per_step_bytes(t) <= budget and t <= max(m_rows, 128):
            return t
    return 128


def _deform_matmul_pallas(xq4, g4, w2, e_mat, tm):
    """xq4: [4, K, Mp] bf16, g4: [4, N, Mp] bf16, w2: [OUTC, K] bf16,
       e_mat: [K, N] bf16.  Returns [OUTC, Mp] f32."""
    _, K, Mp = xq4.shape
    N = g4.shape[1]
    OUTC = w2.shape[0]

    return pl.pallas_call(
        _deform_conv_kernel,
        out_shape=jax.ShapeDtypeStruct((OUTC, Mp), jnp.float32),
        grid=(Mp // tm,),
        in_specs=[
            pl.BlockSpec((4, K, tm), lambda i: (0, 0, i)),
            pl.BlockSpec((4, N, tm), lambda i: (0, 0, i)),
            pl.BlockSpec((OUTC, K), lambda i: (0, 0)),   # constant weight block
            pl.BlockSpec((K, N), lambda i: (0, 0)),      # constant one-hot block
        ],
        out_specs=pl.BlockSpec((OUTC, tm), lambda i: (0, i)),
        compiler_params=pltpu.CompilerParams(
            dimension_semantics=("parallel",),
            vmem_limit_bytes=48 * 1024 * 1024,
        ),
    )(xq4, g4, w2, e_mat)


# ----------------------------------------------------------------------------
# Coordinate math + bilinear weights (straight port of the PyTorch module).
# ----------------------------------------------------------------------------
def _corner_indices_and_weights(x_pad, offset, ks, padding):
    """Returns ((q_lt, q_rb, q_lb, q_rt), (g_lt, g_rb, g_lb, g_rt)).
       q_*: [B, H, W, 2N] int32 integer corner coords (into the padded image),
       g_*: [B, H, W, N]  float bilinear weights."""
    N = offset.shape[1] // 2
    H, W = offset.shape[2], offset.shape[3]
    Hp, Wp = x_pad.shape[2], x_pad.shape[3]
    dtype = x_pad.dtype

    # offset channel reorder: (x0,y0,x1,y1,...) -> (x0..xN-1, y0..yN-1)
    offset_r = jnp.concatenate([offset[:, 0::2], offset[:, 1::2]], axis=1)

    # p = p_0 + p_n + offset.  p_0 uses arange(1, H+1)/(1, W+1) exactly like the
    # reference module (which implicitly assumes padding == 1).
    rng = jnp.arange(-(ks - 1) // 2, (ks - 1) // 2 + 1)
    pnx, pny = jnp.meshgrid(rng, rng, indexing="ij")
    p_n = jnp.concatenate([pnx.reshape(-1), pny.reshape(-1)]
                          ).reshape(1, 2 * N, 1, 1).astype(dtype)

    p0x, p0y = jnp.meshgrid(jnp.arange(1, H + 1), jnp.arange(1, W + 1), indexing="ij")
    p0x = jnp.tile(p0x.reshape(1, 1, H, W), (1, N, 1, 1))
    p0y = jnp.tile(p0y.reshape(1, 1, H, W), (1, N, 1, 1))
    p_0 = jnp.concatenate([p0x, p0y], axis=1).astype(dtype)

    p = p_0 + p_n + offset_r                      # [B, 2N, H, W]
    p = jnp.transpose(p, (0, 2, 3, 1))            # [B, H, W, 2N]

    clamp_x = lambda t: jnp.clip(t, 0, Hp - 1)
    clamp_y = lambda t: jnp.clip(t, 0, Wp - 1)

    q_lt_f = jnp.floor(p)
    q_rb_f = q_lt_f + 1.0
    q_lt = jnp.concatenate([clamp_x(q_lt_f[..., :N]), clamp_y(q_lt_f[..., N:])],
                           axis=-1).astype(jnp.int32)
    q_rb = jnp.concatenate([clamp_x(q_rb_f[..., :N]), clamp_y(q_rb_f[..., N:])],
                           axis=-1).astype(jnp.int32)
    q_lb = jnp.concatenate([q_lt[..., :N], q_rb[..., N:]], axis=-1)
    q_rt = jnp.concatenate([q_rb[..., :N], q_lt[..., N:]], axis=-1)

    mask = jnp.concatenate(
        [jnp.logical_or(p[..., :N] < padding, p[..., :N] > Hp - 1 - padding),
         jnp.logical_or(p[..., N:] < padding, p[..., N:] > Wp - 1 - padding)],
        axis=-1).astype(dtype)
    p = p * (1 - mask) + jnp.floor(p) * mask
    p = jnp.concatenate([clamp_x(p[..., :N]), clamp_y(p[..., N:])], axis=-1)

    qf = lambda q: q.astype(dtype)
    g_lt = (1 + (qf(q_lt[..., :N]) - p[..., :N])) * (1 + (qf(q_lt[..., N:]) - p[..., N:]))
    g_rb = (1 - (qf(q_rb[..., :N]) - p[..., :N])) * (1 - (qf(q_rb[..., N:]) - p[..., N:]))
    g_lb = (1 + (qf(q_lb[..., :N]) - p[..., :N])) * (1 - (qf(q_lb[..., N:]) - p[..., N:]))
    g_rt = (1 - (qf(q_rt[..., :N]) - p[..., :N])) * (1 + (qf(q_rt[..., N:]) - p[..., N:]))

    return (q_lt, q_rb, q_lb, q_rt), (g_lt, g_rb, g_lb, g_rt)


# ----------------------------------------------------------------------------
# Full forward: glue (coords + gather) in JAX, combine + conv matmul in Pallas.
# ----------------------------------------------------------------------------
@functools.partial(jax.jit, static_argnames=("kernel_size", "padding", "tm"))
def _deform_conv2d_jit(x, offset, weight, kernel_size, padding, tm):
    B, C, H, W = x.shape
    ks = kernel_size
    N = offset.shape[1] // 2
    OUTC = weight.shape[0]

    x_pad = jnp.pad(x, ((0, 0), (0, 0), (padding, padding), (padding, padding)))
    Hp, Wp = H + 2 * padding, W + 2 * padding

    qs, gs = _corner_indices_and_weights(x_pad, offset, ks, padding)

    M = B * H * W
    K = C * N

    # --- one merged gather of all 4 corners, de-replicated over channels ---
    # TODO(synk): data-dependent gather stays in XLA glue (single fused take).
    b_idx = jnp.arange(B, dtype=jnp.int32).reshape(B, 1, 1, 1)

    def flat_idx(q):
        f = b_idx * (Hp * Wp) + q[..., :N] * Wp + q[..., N:]        # [B, H, W, N]
        return jnp.transpose(f, (3, 0, 1, 2)).reshape(N * M)        # j = n*M + m

    idx4 = jnp.stack([flat_idx(q) for q in qs], axis=0)             # [4, N*M] int32
    # source rounded to bf16 before the gather -> gathered intermediate is bf16.
    x_src = jnp.transpose(x_pad, (1, 0, 2, 3)).reshape(C, B * Hp * Wp)
    x_src = x_src.astype(jnp.bfloat16)
    xq4 = jnp.take(x_src, idx4, axis=1)                             # [C, 4, N*M]
    xq4 = jnp.transpose(xq4.reshape(C, 4, N, M), (1, 0, 2, 3)).reshape(4, K, M)

    # bilinear weights kept at width N (not tiled C-fold): [4, N, M], bf16 stream
    g4 = jnp.stack(gs, axis=0)                                      # [4, B, H, W, N]
    g4 = jnp.transpose(g4, (0, 4, 1, 2, 3)).reshape(4, N, M).astype(jnp.bfloat16)

    Mp = ((M + tm - 1) // tm) * tm
    if Mp != M:                     # padded lanes are sliced off after the kernel
        xq4 = jnp.pad(xq4, ((0, 0), (0, 0), (0, Mp - M)))
        g4 = jnp.pad(g4, ((0, 0), (0, 0), (0, Mp - M)))

    # conv weight [OUTC, C, ks, ks] applied with stride=ks over the ks-expanded
    # map is exactly a contraction over k = c*N + n.  bf16 operands, f32 acc.
    w2 = weight.reshape(OUTC, K).astype(jnp.bfloat16)
    e_mat = (jnp.arange(K, dtype=jnp.int32)[:, None] % N
             == jnp.arange(N, dtype=jnp.int32)[None, :]).astype(jnp.bfloat16)

    out2d = _deform_matmul_pallas(xq4, g4, w2, e_mat, tm)           # [OUTC, Mp] f32
    out = out2d[:, :M].reshape(OUTC, B, H, W)
    return jnp.transpose(out, (1, 0, 2, 3)).astype(x.dtype)         # NCHW


def deform_conv2d_forward(x, offset, weight, kernel_size=3, padding=1):
    B, C, H, W = x.shape
    N = offset.shape[1] // 2
    OUTC = weight.shape[0]
    tm = _pick_tm(B * H * W, C * N, N, OUTC, _num_tensorcores_per_chip())
    return _deform_conv2d_jit(x, offset, weight, kernel_size, padding, tm)


# ----------------------------------------------------------------------------
# Plain-JAX f32 reference (naive per-corner gather + einsum) for validation.
# ----------------------------------------------------------------------------
@functools.partial(jax.jit, static_argnames=("kernel_size", "padding"))
def deform_conv2d_reference(x, offset, weight, kernel_size=3, padding=1):
    B, C, H, W = x.shape
    ks = kernel_size
    N = offset.shape[1] // 2
    OUTC = weight.shape[0]
    x_pad = jnp.pad(x, ((0, 0), (0, 0), (padding, padding), (padding, padding)))
    Hp, Wp = H + 2 * padding, W + 2 * padding
    (q_lt, q_rb, q_lb, q_rt), (g_lt, g_rb, g_lb, g_rt) = \
        _corner_indices_and_weights(x_pad, offset, ks, padding)

    x_flat = x_pad.reshape(B, C, Hp * Wp)

    def gather(q):
        idx = q[..., :N] * Wp + q[..., N:]
        idx = jnp.broadcast_to(idx.reshape(B, 1, H * W * N), (B, C, H * W * N))
        return jnp.take_along_axis(x_flat, idx, axis=2).reshape(B, C, H, W, N)

    x_off = (g_lt[:, None] * gather(q_lt) + g_rb[:, None] * gather(q_rb)
             + g_lb[:, None] * gather(q_lb) + g_rt[:, None] * gather(q_rt))
    w3 = weight.reshape(OUTC, C, N)
    return jnp.einsum("bchwn,ocn->bohw", x_off, w3)


if __name__ == "__main__":
    # small deterministic configuration: inc=4, outc=8, ks=3, padding=1
    B, C, H, W = 2, 4, 16, 16
    ks, padding, OUTC = 3, 1, 8
    N = ks * ks

    key = jax.random.PRNGKey(0)
    kx, koff, kw = jax.random.split(key, 3)
    x = jax.random.normal(kx, (B, C, H, W), dtype=jnp.float32)
    offset = 2.0 * jax.random.normal(koff, (B, 2 * N, H, W), dtype=jnp.float32)
    weight = 0.1 * jax.random.normal(kw, (OUTC, C, ks, ks), dtype=jnp.float32)

    out = deform_conv2d_forward(x, offset, weight, kernel_size=ks, padding=padding)
    out = jax.block_until_ready(out)
    assert out.shape == (B, OUTC, H, W), out.shape
    assert bool(jnp.all(jnp.isfinite(out)))

    ref = deform_conv2d_reference(x, offset, weight, kernel_size=ks, padding=padding)
    ref = jax.block_until_ready(ref)
    err = float(jnp.max(jnp.abs(out - ref)))
    scale = float(jnp.max(jnp.abs(ref))) + 1e-6
    # bf16 streams (x, g, w) + bf16 combine vs the f32 reference.
    assert err <= 0.05 * scale + 0.05, f"max abs err {err} (scale {scale})"

    print("KERNEL_OK")
</pallas_src>

<mosaic_0001>
module attributes {stable_mosaic.version = 11 : i64} {
  func.func @_deform_conv_kernel(%arg0: i32, %arg1: memref<4x36x512xbf16, #tpu.memory_space<vmem>>, %arg2: memref<4x9x512xbf16, #tpu.memory_space<vmem>>, %arg3: memref<8x36xbf16, #tpu.memory_space<vmem>>, %arg4: memref<36x9xbf16, #tpu.memory_space<vmem>>, %arg5: memref<8x512xf32, #tpu.memory_space<vmem>>) attributes {dimension_semantics = [#tpu.dimension_semantics<parallel>], iteration_bounds = array<i64: 1>, scalar_prefetch = 0 : i64, scratch_operands = 0 : i64, tpu.core_type = #tpu.core_type<tc>, window_params = [{transform_indices = @transform_0, window_bounds = array<i64: 4, 36, 512>}, {transform_indices = @transform_1, window_bounds = array<i64: 4, 9, 512>}, {pipeline_mode = #tpu.pipeline_mode<synchronous>, transform_indices = @transform_2, window_bounds = array<i64: 8, 36>}, {pipeline_mode = #tpu.pipeline_mode<synchronous>, transform_indices = @transform_3, window_bounds = array<i64: 36, 9>}, {transform_indices = @transform_4, window_bounds = array<i64: 8, 512>}]} {
    %c0 = arith.constant 0 : index
    %c0_0 = arith.constant 0 : index
    %0 = vector.load %arg3[%c0, %c0_0] : memref<8x36xbf16, #tpu.memory_space<vmem>>, vector<8x36xbf16>
    %c0_1 = arith.constant 0 : index
    %c0_2 = arith.constant 0 : index
    %1 = vector.load %arg4[%c0_1, %c0_2] : memref<36x9xbf16, #tpu.memory_space<vmem>>, vector<36x9xbf16>
    %c0_3 = arith.constant 0 : index
    %c0_4 = arith.constant 0 : index
    %c0_5 = arith.constant 0 : index
    %2 = vector.load %arg2[%c0_3, %c0_4, %c0_5] : memref<4x9x512xbf16, #tpu.memory_space<vmem>>, vector<1x9x512xbf16>
    %3 = vector.shape_cast %2 : vector<1x9x512xbf16> to vector<9x512xbf16>
    %cst = arith.constant dense<0.000000e+00> : vector<36x512xf32>
    %4 = tpu.matmul %1, %3, %cst {dimension_numbers = #tpu.dot_dimension_numbers<[1], [0], [0], [1], [0, 0, 1, 1], [], []>} : vector<36x9xbf16>, vector<9x512xbf16>, vector<36x512xf32> -> vector<36x512xf32>
    %5 = arith.truncf %4 : vector<36x512xf32> to vector<36x512xbf16>
    %c0_6 = arith.constant 0 : index
    %c0_7 = arith.constant 0 : index
    %c0_8 = arith.constant 0 : index
    %6 = vector.load %arg1[%c0_6, %c0_7, %c0_8] : memref<4x36x512xbf16, #tpu.memory_space<vmem>>, vector<1x36x512xbf16>
    %7 = vector.shape_cast %6 : vector<1x36x512xbf16> to vector<36x512xbf16>
    %8 = arith.mulf %5, %7 : vector<36x512xbf16>
    %cst_9 = arith.constant dense<0.000000e+00> : vector<8x512xf32>
    %9 = tpu.matmul %0, %8, %cst_9 {dimension_numbers = #tpu.dot_dimension_numbers<[1], [0], [0], [1], [0, 0, 1, 1], [], []>} : vector<8x36xbf16>, vector<36x512xbf16>, vector<8x512xf32> -> vector<8x512xf32>
    %c1 = arith.constant 1 : index
    %c0_10 = arith.constant 0 : index
    %c0_11 = arith.constant 0 : index
    %10 = vector.load %arg2[%c1, %c0_10, %c0_11] : memref<4x9x512xbf16, #tpu.memory_space<vmem>>, vector<1x9x512xbf16>
    %11 = vector.shape_cast %10 : vector<1x9x512xbf16> to vector<9x512xbf16>
    %cst_12 = arith.constant dense<0.000000e+00> : vector<36x512xf32>
    %12 = tpu.matmul %1, %11, %cst_12 {dimension_numbers = #tpu.dot_dimension_numbers<[1], [0], [0], [1], [0, 0, 1, 1], [], []>} : vector<36x9xbf16>, vector<9x512xbf16>, vector<36x512xf32> -> vector<36x512xf32>
    %13 = arith.truncf %12 : vector<36x512xf32> to vector<36x512xbf16>
    %c1_13 = arith.constant 1 : index
    %c0_14 = arith.constant 0 : index
    %c0_15 = arith.constant 0 : index
    %14 = vector.load %arg1[%c1_13, %c0_14, %c0_15] : memref<4x36x512xbf16, #tpu.memory_space<vmem>>, vector<1x36x512xbf16>
    %15 = vector.shape_cast %14 : vector<1x36x512xbf16> to vector<36x512xbf16>
    %16 = arith.mulf %13, %15 : vector<36x512xbf16>
    %cst_16 = arith.constant dense<0.000000e+00> : vector<8x512xf32>
    %17 = tpu.matmul %0, %16, %cst_16 {dimension_numbers = #tpu.dot_dimension_numbers<[1], [0], [0], [1], [0, 0, 1, 1], [], []>} : vector<8x36xbf16>, vector<36x512xbf16>, vector<8x512xf32> -> vector<8x512xf32>
    %18 = arith.addf %9, %17 : vector<8x512xf32>
    %c2 = arith.constant 2 : index
    %c0_17 = arith.constant 0 : index
    %c0_18 = arith.constant 0 : index
    %19 = vector.load %arg2[%c2, %c0_17, %c0_18] : memref<4x9x512xbf16, #tpu.memory_space<vmem>>, vector<1x9x512xbf16>
    %20 = vector.shape_cast %19 : vector<1x9x512xbf16> to vector<9x512xbf16>
    %cst_19 = arith.constant dense<0.000000e+00> : vector<36x512xf32>
    %21 = tpu.matmul %1, %20, %cst_19 {dimension_numbers = #tpu.dot_dimension_numbers<[1], [0], [0], [1], [0, 0, 1, 1], [], []>} : vector<36x9xbf16>, vector<9x512xbf16>, vector<36x512xf32> -> vector<36x512xf32>
    %22 = arith.truncf %21 : vector<36x512xf32> to vector<36x512xbf16>
    %c2_20 = arith.constant 2 : index
    %c0_21 = arith.constant 0 : index
    %c0_22 = arith.constant 0 : index
    %23 = vector.load %arg1[%c2_20, %c0_21, %c0_22] : memref<4x36x512xbf16, #tpu.memory_space<vmem>>, vector<1x36x512xbf16>
    %24 = vector.shape_cast %23 : vector<1x36x512xbf16> to vector<36x512xbf16>
    %25 = arith.mulf %22, %24 : vector<36x512xbf16>
    %cst_23 = arith.constant dense<0.000000e+00> : vector<8x512xf32>
    %26 = tpu.matmul %0, %25, %cst_23 {dimension_numbers = #tpu.dot_dimension_numbers<[1], [0], [0], [1], [0, 0, 1, 1], [], []>} : vector<8x36xbf16>, vector<36x512xbf16>, vector<8x512xf32> -> vector<8x512xf32>
    %27 = arith.addf %18, %26 : vector<8x512xf32>
    %c3 = arith.constant 3 : index
    %c0_24 = arith.constant 0 : index
    %c0_25 = arith.constant 0 : index
    %28 = vector.load %arg2[%c3, %c0_24, %c0_25] : memref<4x9x512xbf16, #tpu.memory_space<vmem>>, vector<1x9x512xbf16>
    %29 = vector.shape_cast %28 : vector<1x9x512xbf16> to vector<9x512xbf16>
    %cst_26 = arith.constant dense<0.000000e+00> : vector<36x512xf32>
    %30 = tpu.matmul %1, %29, %cst_26 {dimension_numbers = #tpu.dot_dimension_numbers<[1], [0], [0], [1], [0, 0, 1, 1], [], []>} : vector<36x9xbf16>, vector<9x512xbf16>, vector<36x512xf32> -> vector<36x512xf32>
    %31 = arith.truncf %30 : vector<36x512xf32> to vector<36x512xbf16>
    %c3_27 = arith.constant 3 : index
    %c0_28 = arith.constant 0 : index
    %c0_29 = arith.constant 0 : index
    %32 = vector.load %arg1[%c3_27, %c0_28, %c0_29] : memref<4x36x512xbf16, #tpu.memory_space<vmem>>, vector<1x36x512xbf16>
    %33 = vector.shape_cast %32 : vector<1x36x512xbf16> to vector<36x512xbf16>
    %34 = arith.mulf %31, %33 : vector<36x512xbf16>
    %cst_30 = arith.constant dense<0.000000e+00> : vector<8x512xf32>
    %35 = tpu.matmul %0, %34, %cst_30 {dimension_numbers = #tpu.dot_dimension_numbers<[1], [0], [0], [1], [0, 0, 1, 1], [], []>} : vector<8x36xbf16>, vector<36x512xbf16>, vector<8x512xf32> -> vector<8x512xf32>
    %36 = arith.addf %27, %35 : vector<8x512xf32>
    %c0_31 = arith.constant 0 : index
    %c0_32 = arith.constant 0 : index
    %37 = vector.load %arg5[%c0_31, %c0_32] : memref<8x512xf32, #tpu.memory_space<vmem>>, vector<8x512xf32>
    tpu.vector_store %arg5[%c0_31, %c0_32], %36 {strides = array<i32>} : memref<8x512xf32, #tpu.memory_space<vmem>>, vector<8x512xf32>,
    return
  }
  func.func @transform_0(%arg0: i32) -> (i32, i32, i32) {
    %c0_i32 = arith.constant 0 : i32
    %c0_i32_0 = arith.constant 0 : i32
    %c0_i32_1 = arith.constant 0 : i32
    return %c0_i32, %c0_i32_0, %arg0 : i32, i32, i32
  }
  func.func @transform_1(%arg0: i32) -> (i32, i32, i32) {
    %c0_i32 = arith.constant 0 : i32
    %c0_i32_0 = arith.constant 0 : i32
    %c0_i32_1 = arith.constant 0 : i32
    return %c0_i32, %c0_i32_0, %arg0 : i32, i32, i32
  }
  func.func @transform_2(%arg0: i32) -> (i32, i32) {
    %c0_i32 = arith.constant 0 : i32
    %c0_i32_0 = arith.constant 0 : i32
    %c0_i32_1 = arith.constant 0 : i32
    return %c0_i32, %c0_i32_0 : i32, i32
  }
  func.func @transform_3(%arg0: i32) -> (i32, i32) {
    %c0_i32 = arith.constant 0 : i32
    %c0_i32_0 = arith.constant 0 : i32
    %c0_i32_1 = arith.constant 0 : i32
    return %c0_i32, %c0_i32_0 : i32, i32
  }
  func.func @transform_4(%arg0: i32) -> (i32, i32) {
    %c0_i32 = arith.constant 0 : i32
    %c0_i32_0 = arith.constant 0 : i32
    return %c0_i32, %arg0 : i32, i32
  }
}

</mosaic_0001>

<llo_original>
// kernel: _deform_conv2d_jit.1
$region0: #{_deform_conv2d_jit.1}
  #allocation0 [shape = 'u32[]', space=smem, size = 0x4, offset = 0x4, fixed_abs, tag = 'smem constant byte address 0x4 - core index']
  #allocation1 [shape = 'u32[72,128]{1,0:T(1,128)}', space=vmem, size = 0x9000, scoped, tag = 'internal scratch']
  %s0 = inlined_call_operand.vmem [shape: bf16[4,36,512], index: 0, kind: input, shape index: {}]
  %s1 = inlined_call_operand.vmem [shape: bf16[4,9,512], index: 1, kind: input, shape index: {}]
  %s2 = inlined_call_operand.vmem [shape: bf16[8,36], index: 2, kind: input, shape index: {}]
  %s3 = inlined_call_operand.vmem [shape: bf16[36,9], index: 3, kind: input, shape index: {}]
  %s4 = inlined_call_operand.vmem [shape: f32[8,512], index: 4, kind: output, shape index: {}]
  %s5 = sld [smem:[#allocation0]]
  $region26: #{_deform_conv2d_jit.1} parent=0
    _
  %s7 = ssub.s32 1, %s5
  %s8 = scalar_select 0, %s7, %s5
  // Predicated region
  $region2: #{_deform_conv2d_jit.1} parent=0 // pred_check
    _
  $region3: #{_deform_conv2d_jit.1} parent=0 // pred_check_branch
    %10 = sbr.rel (0) target = $region5
  $region4: #{_deform_conv2d_jit.1} parent=0 // pred_region
    _
  $region5: #{_deform_conv2d_jit.1} parent=0 // pred_fallthru
    _
  // Predicated region
  $region6: #{_deform_conv2d_jit.1} parent=0 // pred_check
    _
  $region7: #{_deform_conv2d_jit.1} parent=0 // pred_check_branch
    %12 = sbr.rel (0) target = $region9
  $region8: #{_deform_conv2d_jit.1} parent=0 // pred_region
    _
  $region9: #{_deform_conv2d_jit.1} parent=0 // pred_fallthru
    _
  // Predicated region
  $region10: #{_deform_conv2d_jit.1} parent=0 // pred_check
    _
  $region11: #{_deform_conv2d_jit.1} parent=0 // pred_check_branch
    %14 = sbr.rel (0) target = $region13
  $region12: #{_deform_conv2d_jit.1} parent=0 // pred_region
    _
  $region13: #{_deform_conv2d_jit.1} parent=0 // pred_fallthru
    _
  // Predicated region
  $region14: #{_deform_conv2d_jit.1} parent=0 // pred_check
    _
  $region15: #{_deform_conv2d_jit.1} parent=0 // pred_check_branch
    %16 = sbr.rel (0) target = $region17
  $region16: #{_deform_conv2d_jit.1} parent=0 // pred_region
    _
  $region17: #{_deform_conv2d_jit.1} parent=0 // pred_fallthru
    _
  %v18 = vld [vmem:[%s2] sm:$0xf]
  %v19 = vld [vmem:[%s3] sm:$0xf]
  %v20 = vld [vmem:[%s3 + $0x4] sm:$0xf]
  %v21 = vld [vmem:[%s3 + $0x8] sm:$0xf]
  %v22 = vld [vmem:[%s3 + $0xc] sm:$0xf]
  %v23 = vld [vmem:[%s3 + $0x10] sm:$0x3]
  %v24 = vld [vmem:[%s1] sm:$0xff]
  %v25 = vld [vmem:[%s1 + $0x8] sm:$0xff]
  %v26 = vld [vmem:[%s1 + $0x10] sm:$0x11]
  %v27 = vld [vmem:[%s1 + $0x18] sm:$0x11]
  %v33 = vunpack.c.l.b16 %v19
  %v34 = vunpack.c.l.b16 %v20
  %v35 = vunpack.c.l.b16 %v21
  %v36 = vunpack.c.l.b16 %v22
  %v37 = vunpack.c.l.b16 %v23
  %v38 = vpack.c.b16 %v34, %v33
  %v39 = vpack.c.b16 %v36, %v35
  %v40 = vpack.c.b16 %v37, %v37
  %v45 = vunpack.c.l.b16 %v24
  %v46 = vunpack.c.h.b16 %v24
  %v47 = vunpack.c.l.b16 %v25
  %v48 = vunpack.c.h.b16 %v25
  %v49 = vunpack.c.l.b16 %v26
  %v50 = vunpack.c.h.b16 %v26
  %v51 = vunpack.c.l.b16 %v27
  %v52 = vunpack.c.h.b16 %v27
  %v53 = vpack.c.b16 %v49, %v45
  %v54 = vpack.c.b16 %v50, %v46
  %v55 = vpack.c.b16 %v51, %v47
  %v56 = vpack.c.b16 %v52, %v48
  %vm57 = vcmask 72704
  %v59 = vsel %vm57, %v38, 0
  %v62 = vsel %vm57, %v39, 0
  %v65 = vsel %vm57, %v40, 0
  %vm67 = vcmask 1043456
  %vm68 = vcmask 1044480
  %v69 = vsel %vm67, 4294967295, 65535
  %v70 = vsel %vm68, %v69, 0
  %v72 = vand.u32 %v53, %v70
  %v75 = vand.u32 %v54, %v70
  %v78 = vand.u32 %v55, %v70
  %v81 = vand.u32 %v56, %v70
  %83 = vmatpush.bf16.msra.mxu0 0
  %84 = vmatpush.bf16.msra.mxu0 0
  %85 = vmatpush.bf16.msra.mxu0 0
  %86 = vmatpush.bf16.msra.mxu0 0
  %87 = vmatpush.bf16.msra.mxu0 0
  %88 = vmatpush.bf16.msra.mxu0 0
  %89 = vmatpush.bf16.msra.mxu0 0
  %90 = vmatpush.bf16.msra.mxu0 %v72
  %91 = vmatmul.bf16.gmra.mxu0 %v59
  %v92 = vpop.f32.mrf.mxu0
  %v93 = vadd.f32 0.0, %v92
  %v94 = vpop.f32.mrf.mxu0
  %v95 = vadd.f32 0.0, %v94
  %96 = vmatmul.bf16.gmra.mxu0 %v62
  %v97 = vpop.f32.mrf.mxu0
  %v98 = vadd.f32 0.0, %v97
  %v99 = vpop.f32.mrf.mxu0
  %v100 = vadd.f32 0.0, %v99
  %101 = vmatmul.bf16.gmra.mxu0 %v65
  %v102 = vpop.f32.mrf.mxu0
  %v103 = vadd.f32 0.0, %v102
  %v104 = vpop.f32.mrf.mxu0
  %105 = vdwg.mxu0
  %106 = vmatpush.bf16.msra.mxu0 0
  %107 = vmatpush.bf16.msra.mxu0 0
  %108 = vmatpush.bf16.msra.mxu0 0
  %109 = vmatpush.bf16.msra.mxu0 0
  %110 = vmatpush.bf16.msra.mxu0 0
  %111 = vmatpush.bf16.msra.mxu0 0
  %112 = vmatpush.bf16.msra.mxu0 0
  %113 = vmatpush.bf16.msra.mxu0 %v75
  %114 = vmatmul.bf16.gmra.mxu0 %v59
  %v115 = vpop.f32.mrf.mxu0
  %v116 = vadd.f32 0.0, %v115
  %v117 = vpop.f32.mrf.mxu0
  %v118 = vadd.f32 0.0, %v117
  %119 = vmatmul.bf16.gmra.mxu0 %v62
  %v120 = vpop.f32.mrf.mxu0
  %v121 = vadd.f32 0.0, %v120
  %v122 = vpop.f32.mrf.mxu0
  %v123 = vadd.f32 0.0, %v122
  %124 = vmatmul.bf16.gmra.mxu0 %v65
  %v125 = vpop.f32.mrf.mxu0
  %v126 = vadd.f32 0.0, %v125
  %v127 = vpop.f32.mrf.mxu0
  %128 = vdwg.mxu0
  %129 = vmatpush.bf16.msra.mxu0 0
  %130 = vmatpush.bf16.msra.mxu0 0
  %131 = vmatpush.bf16.msra.mxu0 0
  %132 = vmatpush.bf16.msra.mxu0 0
  %133 = vmatpush.bf16.msra.mxu0 0
  %134 = vmatpush.bf16.msra.mxu0 0
  %135 = vmatpush.bf16.msra.mxu0 0
  %136 = vmatpush.bf16.msra.mxu0 %v78
  %137 = vmatmul.bf16.gmra.mxu0 %v59
  %v138 = vpop.f32.mrf.mxu0
  %v139 = vadd.f32 0.0, %v138
  %v140 = vpop.f32.mrf.mxu0
  %v141 = vadd.f32 0.0, %v140
  %142 = vmatmul.bf16.gmra.mxu0 %v62
  %v143 = vpop.f32.mrf.mxu0
  %v144 = vadd.f32 0.0, %v143
  %v145 = vpop.f32.mrf.mxu0
  %v146 = vadd.f32 0.0, %v145
  %147 = vmatmul.bf16.gmra.mxu0 %v65
  %v148 = vpop.f32.mrf.mxu0
  %v149 = vadd.f32 0.0, %v148
  %v150 = vpop.f32.mrf.mxu0
  %151 = vdwg.mxu0
  %152 = vmatpush.bf16.msra.mxu0 0
  %153 = vmatpush.bf16.msra.mxu0 0
  %154 = vmatpush.bf16.msra.mxu0 0
  %155 = vmatpush.bf16.msra.mxu0 0
  %156 = vmatpush.bf16.msra.mxu0 0
  %157 = vmatpush.bf16.msra.mxu0 0
  %158 = vmatpush.bf16.msra.mxu0 0
  %159 = vmatpush.bf16.msra.mxu0 %v81
  %160 = vmatmul.bf16.gmra.mxu0 %v59
  %v161 = vpop.f32.mrf.mxu0
  %v162 = vadd.f32 0.0, %v161
  %v163 = vpop.f32.mrf.mxu0
  %v164 = vadd.f32 0.0, %v163
  %165 = vmatmul.bf16.gmra.mxu0 %v62
  %v166 = vpop.f32.mrf.mxu0
  %v167 = vadd.f32 0.0, %v166
  %v168 = vpop.f32.mrf.mxu0
  %v169 = vadd.f32 0.0, %v168
  %170 = vmatmul.bf16.gmra.mxu0 %v65
  %v171 = vpop.f32.mrf.mxu0
  %v172 = vadd.f32 0.0, %v171
  %v173 = vpop.f32.mrf.mxu0
  %174 = vdwg.mxu0
  %v175 = vpack.c.bf16 %v116, %v93
  %v176 = vpack.c.bf16 %v162, %v139
  %v177 = vpack.c.bf16 %v118, %v95
  %v178 = vpack.c.bf16 %v164, %v141
  %v179 = vpack.c.bf16 %v121, %v98
  %v180 = vpack.c.bf16 %v167, %v144
  %v181 = vpack.c.bf16 %v123, %v100
  %v182 = vpack.c.bf16 %v169, %v146
  %v183 = vpack.c.bf16 %v126, %v103
  %v184 = vpack.c.bf16 %v172, %v149
  %v185 = vld [vmem:[%s0] sm:$0xff]
  %v186 = vld [vmem:[%s0 + $0x8] sm:$0xff]
  %v187 = vld [vmem:[%s0 + $0x10] sm:$0xff]
  %v188 = vld [vmem:[%s0 + $0x18] sm:$0xff]
  %v189 = vld [vmem:[%s0 + $0x20] sm:$0xff]
  %v190 = vld [vmem:[%s0 + $0x28] sm:$0xff]
  %v191 = vld [vmem:[%s0 + $0x30] sm:$0xff]
  %v192 = vld [vmem:[%s0 + $0x38] sm:$0xff]
  %v193 = vld [vmem:[%s0 + $0x40] sm:$0x33]
  %v194 = vld [vmem:[%s0 + $0x48] sm:$0x33]
  %v195 = vunpack.c.l.bf16 %v175
  %v196 = vunpack.c.h.bf16 %v175
  %v197 = vunpack.c.l.bf16 %v176
  %v198 = vunpack.c.h.bf16 %v176
  %v199 = vunpack.c.l.bf16 %v177
  %v200 = vunpack.c.h.bf16 %v177
  %v201 = vunpack.c.l.bf16 %v178
  %v202 = vunpack.c.h.bf16 %v178
  %v203 = vunpack.c.l.bf16 %v179
  %v204 = vunpack.c.h.bf16 %v179
  %v205 = vunpack.c.l.bf16 %v180
  %v206 = vunpack.c.h.bf16 %v180
  %v207 = vunpack.c.l.bf16 %v181
  %v208 = vunpack.c.h.bf16 %v181
  %v209 = vunpack.c.l.bf16 %v182
  %v210 = vunpack.c.h.bf16 %v182
  %v211 = vunpack.c.l.bf16 %v183
  %v212 = vunpack.c.h.bf16 %v183
  %v213 = vunpack.c.l.bf16 %v184
  %v214 = vunpack.c.h.bf16 %v184
  %v215 = vunpack.c.l.bf16 %v185
  %v216 = vunpack.c.h.bf16 %v185
  %v217 = vunpack.c.l.bf16 %v186
  %v218 = vunpack.c.h.bf16 %v186
  %v219 = vunpack.c.l.bf16 %v187
  %v220 = vunpack.c.h.bf16 %v187
  %v221 = vunpack.c.l.bf16 %v188
  %v222 = vunpack.c.h.bf16 %v188
  %v223 = vunpack.c.l.bf16 %v189
  %v224 = vunpack.c.h.bf16 %v189
  %v225 = vunpack.c.l.bf16 %v190
  %v226 = vunpack.c.h.bf16 %v190
  %v227 = vunpack.c.l.bf16 %v191
  %v228 = vunpack.c.h.bf16 %v191
  %v229 = vunpack.c.l.bf16 %v192
  %v230 = vunpack.c.h.bf16 %v192
  %v231 = vunpack.c.l.bf16 %v193
  %v232 = vunpack.c.h.bf16 %v193
  %v233 = vunpack.c.l.bf16 %v194
  %v234 = vunpack.c.h.bf16 %v194
  %v235 = vmul.f32 %v195, %v215
  %v236 = vmul.f32 %v196, %v216
  %v237 = vmul.f32 %v197, %v217
  %v238 = vmul.f32 %v198, %v218
  %v239 = vmul.f32 %v199, %v219
  %v240 = vmul.f32 %v200, %v220
  %v241 = vmul.f32 %v201, %v221
  %v242 = vmul.f32 %v202, %v222
  %v243 = vmul.f32 %v203, %v223
  %v244 = vmul.f32 %v204, %v224
  %v245 = vmul.f32 %v205, %v225
  %v246 = vmul.f32 %v206, %v226
  %v247 = vmul.f32 %v207, %v227
  %v248 = vmul.f32 %v208, %v228
  %v249 = vmul.f32 %v209, %v229
  %v250 = vmul.f32 %v210, %v230
  %v251 = vmul.f32 %v211, %v231
  %v252 = vmul.f32 %v212, %v232
  %v253 = vmul.f32 %v213, %v233
  %v254 = vmul.f32 %v214, %v234
  %v255 = vpack.c.bf16 %v239, %v235
  %v256 = vpack.c.bf16 %v240, %v236
  %v257 = vpack.c.bf16 %v241, %v237
  %v258 = vpack.c.bf16 %v242, %v238
  %v259 = vpack.c.bf16 %v247, %v243
  %v260 = vpack.c.bf16 %v248, %v244
  %v261 = vpack.c.bf16 %v249, %v245
  %v262 = vpack.c.bf16 %v250, %v246
  %v263 = vpack.c.bf16 %v251, %v251
  %v264 = vpack.c.bf16 %v252, %v252
  %v265 = vpack.c.bf16 %v253, %v253
  %v266 = vpack.c.bf16 %v254, %v254
  %s267 = scalar_lea.vmem %s1, 32
  %v268 = vld [vmem:[%s267] sm:$0xff]
  %v269 = vld [vmem:[%s267 + $0x8] sm:$0xff]
  %v270 = vld [vmem:[%s267 + $0x10] sm:$0x11]
  %v271 = vld [vmem:[%s267 + $0x18] sm:$0x11]
  %v276 = vunpack.c.l.b16 %v268
  %v277 = vunpack.c.h.b16 %v268
  %v278 = vunpack.c.l.b16 %v269
  %v279 = vunpack.c.h.b16 %v269
  %v280 = vunpack.c.l.b16 %v270
  %v281 = vunpack.c.h.b16 %v270
  %v282 = vunpack.c.l.b16 %v271
  %v283 = vunpack.c.h.b16 %v271
  %v284 = vpack.c.b16 %v280, %v276
  %v285 = vpack.c.b16 %v281, %v277
  %v286 = vpack.c.b16 %v282, %v278
  %v287 = vpack.c.b16 %v283, %v279
  %v289 = vand.u32 %v284, %v70
  %v292 = vand.u32 %v285, %v70
  %v295 = vand.u32 %v286, %v70
  %v298 = vand.u32 %v287, %v70
  %300 = vmatpush.bf16.msra.mxu0 0
  %301 = vmatpush.bf16.msra.mxu0 0
  %302 = vmatpush.bf16.msra.mxu0 0
  %303 = vmatpush.bf16.msra.mxu0 0
  %304 = vmatpush.bf16.msra.mxu0 0
  %305 = vmatpush.bf16.msra.mxu0 0
  %306 = vmatpush.bf16.msra.mxu0 0
  %307 = vmatpush.bf16.msra.mxu0 %v289
  %308 = vmatmul.bf16.gmra.mxu0 %v59
  %v309 = vpop.f32.mrf.mxu0
  %v310 = vadd.f32 0.0, %v309
  %v311 = vpop.f32.mrf.mxu0
  %v312 = vadd.f32 0.0, %v311
  %313 = vmatmul.bf16.gmra.mxu0 %v62
  %v314 = vpop.f32.mrf.mxu0
  %v315 = vadd.f32 0.0, %v314
  %v316 = vpop.f32.mrf.mxu0
  %v317 = vadd.f32 0.0, %v316
  %318 = vmatmul.bf16.gmra.mxu0 %v65
  %v319 = vpop.f32.mrf.mxu0
  %v320 = vadd.f32 0.0, %v319
  %v321 = vpop.f32.mrf.mxu0
  %322 = vdwg.mxu0
  %323 = vmatpush.bf16.msra.mxu0 0
  %324 = vmatpush.bf16.msra.mxu0 0
  %325 = vmatpush.bf16.msra.mxu0 0
  %326 = vmatpush.bf16.msra.mxu0 0
  %327 = vmatpush.bf16.msra.mxu0 0
  %328 = vmatpush.bf16.msra.mxu0 0
  %329 = vmatpush.bf16.msra.mxu0 0
  %330 = vmatpush.bf16.msra.mxu0 %v292
  %331 = vmatmul.bf16.gmra.mxu0 %v59
  %v332 = vpop.f32.mrf.mxu0
  %v333 = vadd.f32 0.0, %v332
  %v334 = vpop.f32.mrf.mxu0
  %v335 = vadd.f32 0.0, %v334
  %336 = vmatmul.bf16.gmra.mxu0 %v62
  %v337 = vpop.f32.mrf.mxu0
  %v338 = vadd.f32 0.0, %v337
  %v339 = vpop.f32.mrf.mxu0
  %v340 = vadd.f32 0.0, %v339
  %341 = vmatmul.bf16.gmra.mxu0 %v65
  %v342 = vpop.f32.mrf.mxu0
  %v343 = vadd.f32 0.0, %v342
  %v344 = vpop.f32.mrf.mxu0
  %345 = vdwg.mxu0
  %346 = vmatpush.bf16.msra.mxu0 0
  %347 = vmatpush.bf16.msra.mxu0 0
  %348 = vmatpush.bf16.msra.mxu0 0
  %349 = vmatpush.bf16.msra.mxu0 0
  %350 = vmatpush.bf16.msra.mxu0 0
  %351 = vmatpush.bf16.msra.mxu0 0
  %352 = vmatpush.bf16.msra.mxu0 0
  %353 = vmatpush.bf16.msra.mxu0 %v295
  %354 = vmatmul.bf16.gmra.mxu0 %v59
  %v355 = vpop.f32.mrf.mxu0
  %v356 = vadd.f32 0.0, %v355
  %v357 = vpop.f32.mrf.mxu0
  %v358 = vadd.f32 0.0, %v357
  %359 = vmatmul.bf16.gmra.mxu0 %v62
  %v360 = vpop.f32.mrf.mxu0
  %v361 = vadd.f32 0.0, %v360
  %v362 = vpop.f32.mrf.mxu0
  %v363 = vadd.f32 0.0, %v362
  %364 = vmatmul.bf16.gmra.mxu0 %v65
  %v365 = vpop.f32.mrf.mxu0
  %v366 = vadd.f32 0.0, %v365
  %v367 = vpop.f32.mrf.mxu0
  %368 = vdwg.mxu0
  %369 = vmatpush.bf16.msra.mxu0 0
  %370 = vmatpush.bf16.msra.mxu0 0
  %371 = vmatpush.bf16.msra.mxu0 0
  %372 = vmatpush.bf16.msra.mxu0 0
  %373 = vmatpush.bf16.msra.mxu0 0
  %374 = vmatpush.bf16.msra.mxu0 0
  %375 = vmatpush.bf16.msra.mxu0 0
  %376 = vmatpush.bf16.msra.mxu0 %v298
  %377 = vmatmul.bf16.gmra.mxu0 %v59
  %v378 = vpop.f32.mrf.mxu0
  %v379 = vadd.f32 0.0, %v378
  %v380 = vpop.f32.mrf.mxu0
  %v381 = vadd.f32 0.0, %v380
  %382 = vmatmul.bf16.gmra.mxu0 %v62
  %v383 = vpop.f32.mrf.mxu0
  %v384 = vadd.f32 0.0, %v383
  %v385 = vpop.f32.mrf.mxu0
  %v386 = vadd.f32 0.0, %v385
  %387 = vmatmul.bf16.gmra.mxu0 %v65
  %v388 = vpop.f32.mrf.mxu0
  %v389 = vadd.f32 0.0, %v388
  %v390 = vpop.f32.mrf.mxu0
  %391 = vdwg.mxu0
  %v392 = vpack.c.bf16 %v333, %v310
  %v393 = vpack.c.bf16 %v379, %v356
  %v394 = vpack.c.bf16 %v335, %v312
  %v395 = vpack.c.bf16 %v381, %v358
  %v396 = vpack.c.bf16 %v338, %v315
  %v397 = vpack.c.bf16 %v384, %v361
  %v398 = vpack.c.bf16 %v340, %v317
  %v399 = vpack.c.bf16 %v386, %v363
  %v400 = vpack.c.bf16 %v343, %v320
  %v401 = vpack.c.bf16 %v389, %v366
  %s402 = scalar_lea.vmem %s0, 80
  %v403 = vld [vmem:[%s402] sm:$0xff]
  %v404 = vld [vmem:[%s402 + $0x8] sm:$0xff]
  %v405 = vld [vmem:[%s402 + $0x10] sm:$0xff]
  %v406 = vld [vmem:[%s402 + $0x18] sm:$0xff]
  %v407 = vld [vmem:[%s402 + $0x20] sm:$0xff]
  %v408 = vld [vmem:[%s402 + $0x28] sm:$0xff]
  %v409 = vld [vmem:[%s402 + $0x30] sm:$0xff]
  %v410 = vld [vmem:[%s402 + $0x38] sm:$0xff]
  %v411 = vld [vmem:[%s402 + $0x40] sm:$0x33]
  %v412 = vld [vmem:[%s402 + $0x48] sm:$0x33]
  %v413 = vunpack.c.l.bf16 %v392
  %v414 = vunpack.c.h.bf16 %v392
  %v415 = vunpack.c.l.bf16 %v393
  %v416 = vunpack.c.h.bf16 %v393
  %v417 = vunpack.c.l.bf16 %v394
  %v418 = vunpack.c.h.bf16 %v394
  %v419 = vunpack.c.l.bf16 %v395
  %v420 = vunpack.c.h.bf16 %v395
  %v421 = vunpack.c.l.bf16 %v396
  %v422 = vunpack.c.h.bf16 %v396
  %v423 = vunpack.c.l.bf16 %v397
  %v424 = vunpack.c.h.bf16 %v397
  %v425 = vunpack.c.l.bf16 %v398
  %v426 = vunpack.c.h.bf16 %v398
  %v427 = vunpack.c.l.bf16 %v399
  %v428 = vunpack.c.h.bf16 %v399
  %v429 = vunpack.c.l.bf16 %v400
  %v430 = vunpack.c.h.bf16 %v400
  %v431 = vunpack.c.l.bf16 %v401
  %v432 = vunpack.c.h.bf16 %v401
  %v433 = vunpack.c.l.bf16 %v403
  %v434 = vunpack.c.h.bf16 %v403
  %v435 = vunpack.c.l.bf16 %v404
  %v436 = vunpack.c.h.bf16 %v404
  %v437 = vunpack.c.l.bf16 %v405
  %v438 = vunpack.c.h.bf16 %v405
  %v439 = vunpack.c.l.bf16 %v406
  %v440 = vunpack.c.h.bf16 %v406
  %v441 = vunpack.c.l.bf16 %v407
  %v442 = vunpack.c.h.bf16 %v407
  %v443 = vunpack.c.l.bf16 %v408
  %v444 = vunpack.c.h.bf16 %v408
  %v445 = vunpack.c.l.bf16 %v409
  %v446 = vunpack.c.h.bf16 %v409
  %v447 = vunpack.c.l.bf16 %v410
  %v448 = vunpack.c.h.bf16 %v410
  %v449 = vunpack.c.l.bf16 %v411
  %v450 = vunpack.c.h.bf16 %v411
  %v451 = vunpack.c.l.bf16 %v412
  %v452 = vunpack.c.h.bf16 %v412
  %v453 = vmul.f32 %v413, %v433
  %v454 = vmul.f32 %v414, %v434
  %v455 = vmul.f32 %v415, %v435
  %v456 = vmul.f32 %v416, %v436
  %v457 = vmul.f32 %v417, %v437
  %v458 = vmul.f32 %v418, %v438
  %v459 = vmul.f32 %v419, %v439
  %v460 = vmul.f32 %v420, %v440
  %v461 = vmul.f32 %v421, %v441
  %v462 = vmul.f32 %v422, %v442
  %v463 = vmul.f32 %v423, %v443
  %v464 = vmul.f32 %v424, %v444
  %v465 = vmul.f32 %v425, %v445
  %v466 = vmul.f32 %v426, %v446
  %v467 = vmul.f32 %v427, %v447
  %v468 = vmul.f32 %v428, %v448
  %v469 = vmul.f32 %v429, %v449
  %v470 = vmul.f32 %v430, %v450
  %v471 = vmul.f32 %v431, %v451
  %v472 = vmul.f32 %v432, %v452
  %v473 = vpack.c.bf16 %v457, %v453
  %v474 = vpack.c.bf16 %v458, %v454
  %v475 = vpack.c.bf16 %v459, %v455
  %v476 = vpack.c.bf16 %v460, %v456
  %v477 = vpack.c.bf16 %v465, %v461
  %v478 = vpack.c.bf16 %v466, %v462
  %v479 = vpack.c.bf16 %v467, %v463
  %v480 = vpack.c.bf16 %v468, %v464
  %v481 = vpack.c.bf16 %v469, %v469
  %v482 = vpack.c.bf16 %v470, %v470
  %v483 = vpack.c.bf16 %v471, %v471
  %v484 = vpack.c.bf16 %v472, %v472
  %vm485 = vcmask 293888
  %v487 = vsel %vm485, %v18, 0
  %vm489 = vcmask 1041408
  %v491 = vsel %vm489, %v481, 0
  %v494 = vsel %vm489, %v482, 0
  %v497 = vsel %vm489, %v483, 0
  %v500 = vsel %vm489, %v484, 0
  %502 = vmatpush.bf16.msra.mxu0 0
  %503 = vmatpush.bf16.msra.mxu0 0
  %504 = vmatpush.bf16.msra.mxu0 0
  %505 = vmatpush.bf16.msra.mxu0 0
  %506 = vmatpush.bf16.msra.mxu0 0
  %507 = vmatpush.bf16.msra.mxu0 %v491
  %508 = vmatpush.bf16.msra.mxu0 %v477
  %509 = vmatpush.bf16.msra.mxu0 %v473
  %510 = vmatmul.bf16.gmra.mxu0 %v487
  %v511 = vpop.f32.mrf.mxu0
  %v512 = vadd.f32 0.0, %v511
  %v513 = vpop.f32.mrf.mxu0
  %514 = vdwg.mxu0
  %515 = vmatpush.bf16.msra.mxu0 0
  %516 = vmatpush.bf16.msra.mxu0 0
  %517 = vmatpush.bf16.msra.mxu0 0
  %518 = vmatpush.bf16.msra.mxu0 0
  %519 = vmatpush.bf16.msra.mxu0 0
  %520 = vmatpush.bf16.msra.mxu0 %v494
  %521 = vmatpush.bf16.msra.mxu0 %v478
  %522 = vmatpush.bf16.msra.mxu0 %v474
  %523 = vmatmul.bf16.gmra.mxu0 %v487
  %v524 = vpop.f32.mrf.mxu0
  %v525 = vadd.f32 0.0, %v524
  %v526 = vpop.f32.mrf.mxu0
  %527 = vdwg.mxu0
  %528 = vmatpush.bf16.msra.mxu0 0
  %529 = vmatpush.bf16.msra.mxu0 0
  %530 = vmatpush.bf16.msra.mxu0 0
  %531 = vmatpush.bf16.msra.mxu0 0
  %532 = vmatpush.bf16.msra.mxu0 0
  %533 = vmatpush.bf16.msra.mxu0 %v497
  %534 = vmatpush.bf16.msra.mxu0 %v479
  %535 = vmatpush.bf16.msra.mxu0 %v475
  %536 = vmatmul.bf16.gmra.mxu0 %v487
  %v537 = vpop.f32.mrf.mxu0
  %v538 = vadd.f32 0.0, %v537
  %v539 = vpop.f32.mrf.mxu0
  %540 = vdwg.mxu0
  %541 = vmatpush.bf16.msra.mxu0 0
  %542 = vmatpush.bf16.msra.mxu0 0
  %543 = vmatpush.bf16.msra.mxu0 0
  %544 = vmatpush.bf16.msra.mxu0 0
  %545 = vmatpush.bf16.msra.mxu0 0
  %546 = vmatpush.bf16.msra.mxu0 %v500
  %547 = vmatpush.bf16.msra.mxu0 %v480
  %548 = vmatpush.bf16.msra.mxu0 %v476
  %549 = vmatmul.bf16.gmra.mxu0 %v487
  %v550 = vpop.f32.mrf.mxu0
  %v551 = vadd.f32 0.0, %v550
  %v552 = vpop.f32.mrf.mxu0
  %553 = vdwg.mxu0
  %v555 = vsel %vm489, %v263, 0
  %v558 = vsel %vm489, %v264, 0
  %v561 = vsel %vm489, %v265, 0
  %v564 = vsel %vm489, %v266, 0
  %566 = vmatpush.bf16.msra.mxu0 0
  %567 = vmatpush.bf16.msra.mxu0 0
  %568 = vmatpush.bf16.msra.mxu0 0
  %569 = vmatpush.bf16.msra.mxu0 0
  %570 = vmatpush.bf16.msra.mxu0 0
  %571 = vmatpush.bf16.msra.mxu0 %v555
  %572 = vmatpush.bf16.msra.mxu0 %v259
  %573 = vmatpush.bf16.msra.mxu0 %v255
  %574 = vmatmul.bf16.gmra.mxu0 %v487
  %v575 = vpop.f32.mrf.mxu0
  %v576 = vadd.f32 %v512, %v575
  %v577 = vpop.f32.mrf.mxu0
  %578 = vdwg.mxu0
  %579 = vmatpush.bf16.msra.mxu0 0
  %580 = vmatpush.bf16.msra.mxu0 0
  %581 = vmatpush.bf16.msra.mxu0 0
  %582 = vmatpush.bf16.msra.mxu0 0
  %583 = vmatpush.bf16.msra.mxu0 0
  %584 = vmatpush.bf16.msra.mxu0 %v558
  %585 = vmatpush.bf16.msra.mxu0 %v260
  %586 = vmatpush.bf16.msra.mxu0 %v256
  %587 = vmatmul.bf16.gmra.mxu0 %v487
  %v588 = vpop.f32.mrf.mxu0
  %v589 = vadd.f32 %v525, %v588
  %v590 = vpop.f32.mrf.mxu0
  %591 = vdwg.mxu0
  %592 = vmatpush.bf16.msra.mxu0 0
  %593 = vmatpush.bf16.msra.mxu0 0
  %594 = vmatpush.bf16.msra.mxu0 0
  %595 = vmatpush.bf16.msra.mxu0 0
  %596 = vmatpush.bf16.msra.mxu0 0
  %597 = vmatpush.bf16.msra.mxu0 %v561
  %598 = vmatpush.bf16.msra.mxu0 %v261
  %599 = vmatpush.bf16.msra.mxu0 %v257
  %600 = vmatmul.bf16.gmra.mxu0 %v487
  %v601 = vpop.f32.mrf.mxu0
  %v602 = vadd.f32 %v538, %v601
  %v603 = vpop.f32.mrf.mxu0
  %604 = vdwg.mxu0
  %605 = vmatpush.bf16.msra.mxu0 0
  %606 = vmatpush.bf16.msra.mxu0 0
  %607 = vmatpush.bf16.msra.mxu0 0
  %608 = vmatpush.bf16.msra.mxu0 0
  %609 = vmatpush.bf16.msra.mxu0 0
  %610 = vmatpush.bf16.msra.mxu0 %v564
  %611 = vmatpush.bf16.msra.mxu0 %v262
  %612 = vmatpush.bf16.msra.mxu0 %v258
  %613 = vmatmul.bf16.gmra.mxu0 %v487
  %v614 = vpop.f32.mrf.mxu0
  %v615 = vadd.f32 %v551, %v614
  %v616 = vpop.f32.mrf.mxu0
  %617 = vdwg.mxu0
  %s618 = scalar_lea.vmem %s1, 64
  %v619 = vld [vmem:[%s618] sm:$0xff]
  %v620 = vld [vmem:[%s618 + $0x8] sm:$0xff]
  %v621 = vld [vmem:[%s618 + $0x10] sm:$0x11]
  %v622 = vld [vmem:[%s618 + $0x18] sm:$0x11]
  %v627 = vunpack.c.l.b16 %v619
  %v628 = vunpack.c.h.b16 %v619
  %v629 = vunpack.c.l.b16 %v620
  %v630 = vunpack.c.h.b16 %v620
  %v631 = vunpack.c.l.b16 %v621
  %v632 = vunpack.c.h.b16 %v621
  %v633 = vunpack.c.l.b16 %v622
  %v634 = vunpack.c.h.b16 %v622
  %v635 = vpack.c.b16 %v631, %v627
  %v636 = vpack.c.b16 %v632, %v628
  %v637 = vpack.c.b16 %v633, %v629
  %v638 = vpack.c.b16 %v634, %v630
  %v640 = vand.u32 %v635, %v70
  %v643 = vand.u32 %v636, %v70
  %v646 = vand.u32 %v637, %v70
  %v649 = vand.u32 %v638, %v70
  %651 = vmatpush.bf16.msra.mxu0 0
  %652 = vmatpush.bf16.msra.mxu0 0
  %653 = vmatpush.bf16.msra.mxu0 0
  %654 = vmatpush.bf16.msra.mxu0 0
  %655 = vmatpush.bf16.msra.mxu0 0
  %656 = vmatpush.bf16.msra.mxu0 0
  %657 = vmatpush.bf16.msra.mxu0 0
  %658 = vmatpush.bf16.msra.mxu0 %v640
  %659 = vmatmul.bf16.gmra.mxu0 %v59
  %v660 = vpop.f32.mrf.mxu0
  %v661 = vadd.f32 0.0, %v660
  %v662 = vpop.f32.mrf.mxu0
  %v663 = vadd.f32 0.0, %v662
  %664 = vmatmul.bf16.gmra.mxu0 %v62
  %v665 = vpop.f32.mrf.mxu0
  %v666 = vadd.f32 0.0, %v665
  %v667 = vpop.f32.mrf.mxu0
  %v668 = vadd.f32 0.0, %v667
  %669 = vmatmul.bf16.gmra.mxu0 %v65
  %v670 = vpop.f32.mrf.mxu0
  %v671 = vadd.f32 0.0, %v670
  %v672 = vpop.f32.mrf.mxu0
  %673 = vdwg.mxu0
  %674 = vmatpush.bf16.msra.mxu0 0
  %675 = vmatpush.bf16.msra.mxu0 0
  %676 = vmatpush.bf16.msra.mxu0 0
  %677 = vmatpush.bf16.msra.mxu0 0
  %678 = vmatpush.bf16.msra.mxu0 0
  %679 = vmatpush.bf16.msra.mxu0 0
  %680 = vmatpush.bf16.msra.mxu0 0
  %681 = vmatpush.bf16.msra.mxu0 %v643
  %682 = vmatmul.bf16.gmra.mxu0 %v59
  %v683 = vpop.f32.mrf.mxu0
  %v684 = vadd.f32 0.0, %v683
  %v685 = vpop.f32.mrf.mxu0
  %v686 = vadd.f32 0.0, %v685
  %687 = vmatmul.bf16.gmra.mxu0 %v62
  %v688 = vpop.f32.mrf.mxu0
  %v689 = vadd.f32 0.0, %v688
  %v690 = vpop.f32.mrf.mxu0
  %v691 = vadd.f32 0.0, %v690
  %692 = vmatmul.bf16.gmra.mxu0 %v65
  %v693 = vpop.f32.mrf.mxu0
  %v694 = vadd.f32 0.0, %v693
  %v695 = vpop.f32.mrf.mxu0
  %696 = vdwg.mxu0
  %697 = vmatpush.bf16.msra.mxu0 0
  %698 = vmatpush.bf16.msra.mxu0 0
  %699 = vmatpush.bf16.msra.mxu0 0
  %700 = vmatpush.bf16.msra.mxu0 0
  %701 = vmatpush.bf16.msra.mxu0 0
  %702 = vmatpush.bf16.msra.mxu0 0
  %703 = vmatpush.bf16.msra.mxu0 0
  %704 = vmatpush.bf16.msra.mxu0 %v646
  %705 = vmatmul.bf16.gmra.mxu0 %v59
  %v706 = vpop.f32.mrf.mxu0
  %v707 = vadd.f32 0.0, %v706
  %v708 = vpop.f32.mrf.mxu0
  %v709 = vadd.f32 0.0, %v708
  %710 = vmatmul.bf16.gmra.mxu0 %v62
  %v711 = vpop.f32.mrf.mxu0
  %v712 = vadd.f32 0.0, %v711
  %v713 = vpop.f32.mrf.mxu0
  %v714 = vadd.f32 0.0, %v713
  %715 = vmatmul.bf16.gmra.mxu0 %v65
  %v716 = vpop.f32.mrf.mxu0
  %v717 = vadd.f32 0.0, %v716
  %v718 = vpop.f32.mrf.mxu0
  %719 = vdwg.mxu0
  %720 = vmatpush.bf16.msra.mxu0 0
  %721 = vmatpush.bf16.msra.mxu0 0
  %722 = vmatpush.bf16.msra.mxu0 0
  %723 = vmatpush.bf16.msra.mxu0 0
  %724 = vmatpush.bf16.msra.mxu0 0
  %725 = vmatpush.bf16.msra.mxu0 0
  %726 = vmatpush.bf16.msra.mxu0 0
  %727 = vmatpush.bf16.msra.mxu0 %v649
  %728 = vmatmul.bf16.gmra.mxu0 %v59
  %v729 = vpop.f32.mrf.mxu0
  %v730 = vadd.f32 0.0, %v729
  %v731 = vpop.f32.mrf.mxu0
  %v732 = vadd.f32 0.0, %v731
  %733 = vmatmul.bf16.gmra.mxu0 %v62
  %v734 = vpop.f32.mrf.mxu0
  %v735 = vadd.f32 0.0, %v734
  %v736 = vpop.f32.mrf.mxu0
  %v737 = vadd.f32 0.0, %v736
  %738 = vmatmul.bf16.gmra.mxu0 %v65
  %v739 = vpop.f32.mrf.mxu0
  %v740 = vadd.f32 0.0, %v739
  %v741 = vpop.f32.mrf.mxu0
  %742 = vdwg.mxu0
  %v743 = vpack.c.bf16 %v684, %v661
  %v744 = vpack.c.bf16 %v730, %v707
  %v745 = vpack.c.bf16 %v686, %v663
  %v746 = vpack.c.bf16 %v732, %v709
  %v747 = vpack.c.bf16 %v689, %v666
  %v748 = vpack.c.bf16 %v735, %v712
  %v749 = vpack.c.bf16 %v691, %v668
  %v750 = vpack.c.bf16 %v737, %v714
  %v751 = vpack.c.bf16 %v694, %v671
  %v752 = vpack.c.bf16 %v740, %v717
  %s753 = scalar_lea.vmem %s0, 160
  %v754 = vld [vmem:[%s753] sm:$0xff]
  %v755 = vld [vmem:[%s753 + $0x8] sm:$0xff]
  %v756 = vld [vmem:[%s753 + $0x10] sm:$0xff]
  %v757 = vld [vmem:[%s753 + $0x18] sm:$0xff]
  %v758 = vld [vmem:[%s753 + $0x20] sm:$0xff]
  %v759 = vld [vmem:[%s753 + $0x28] sm:$0xff]
  %v760 = vld [vmem:[%s753 + $0x30] sm:$0xff]
  %v761 = vld [vmem:[%s753 + $0x38] sm:$0xff]
  %v762 = vld [vmem:[%s753 + $0x40] sm:$0x33]
  %v763 = vld [vmem:[%s753 + $0x48] sm:$0x33]
  %v764 = vunpack.c.l.bf16 %v743
  %v765 = vunpack.c.h.bf16 %v743
  %v766 = vunpack.c.l.bf16 %v744
  %v767 = vunpack.c.h.bf16 %v744
  %v768 = vunpack.c.l.bf16 %v745
  %v769 = vunpack.c.h.bf16 %v745
  %v770 = vunpack.c.l.bf16 %v746
  %v771 = vunpack.c.h.bf16 %v746
  %v772 = vunpack.c.l.bf16 %v747
  %v773 = vunpack.c.h.bf16 %v747
  %v774 = vunpack.c.l.bf16 %v748
  %v775 = vunpack.c.h.bf16 %v748
  %v776 = vunpack.c.l.bf16 %v749
  %v777 = vunpack.c.h.bf16 %v749
  %v778 = vunpack.c.l.bf16 %v750
  %v779 = vunpack.c.h.bf16 %v750
  %v780 = vunpack.c.l.bf16 %v751
  %v781 = vunpack.c.h.bf16 %v751
  %v782 = vunpack.c.l.bf16 %v752
  %v783 = vunpack.c.h.bf16 %v752
  %v784 = vunpack.c.l.bf16 %v754
  %v785 = vunpack.c.h.bf16 %v754
  %v786 = vunpack.c.l.bf16 %v755
  %v787 = vunpack.c.h.bf16 %v755
  %v788 = vunpack.c.l.bf16 %v756
  %v789 = vunpack.c.h.bf16 %v756
  %v790 = vunpack.c.l.bf16 %v757
  %v791 = vunpack.c.h.bf16 %v757
  %v792 = vunpack.c.l.bf16 %v758
  %v793 = vunpack.c.h.bf16 %v758
  %v794 = vunpack.c.l.bf16 %v759
  %v795 = vunpack.c.h.bf16 %v759
  %v796 = vunpack.c.l.bf16 %v760
  %v797 = vunpack.c.h.bf16 %v760
  %v798 = vunpack.c.l.bf16 %v761
  %v799 = vunpack.c.h.bf16 %v761
  %v800 = vunpack.c.l.bf16 %v762
  %v801 = vunpack.c.h.bf16 %v762
  %v802 = vunpack.c.l.bf16 %v763
  %v803 = vunpack.c.h.bf16 %v763
  %v804 = vmul.f32 %v764, %v784
  %v805 = vmul.f32 %v765, %v785
  %v806 = vmul.f32 %v766, %v786
  %v807 = vmul.f32 %v767, %v787
  %v808 = vmul.f32 %v768, %v788
  %v809 = vmul.f32 %v769, %v789
  %v810 = vmul.f32 %v770, %v790
  %v811 = vmul.f32 %v771, %v791
  %v812 = vmul.f32 %v772, %v792
  %v813 = vmul.f32 %v773, %v793
  %v814 = vmul.f32 %v774, %v794
  %v815 = vmul.f32 %v775, %v795
  %v816 = vmul.f32 %v776, %v796
  %v817 = vmul.f32 %v777, %v797
  %v818 = vmul.f32 %v778, %v798
  %v819 = vmul.f32 %v779, %v799
  %v820 = vmul.f32 %v780, %v800
  %v821 = vmul.f32 %v781, %v801
  %v822 = vmul.f32 %v782, %v802
  %v823 = vmul.f32 %v783, %v803
  %v824 = vpack.c.bf16 %v808, %v804
  %v825 = vpack.c.bf16 %v809, %v805
  %v826 = vpack.c.bf16 %v810, %v806
  %v827 = vpack.c.bf16 %v811, %v807
  %v828 = vpack.c.bf16 %v816, %v812
  %v829 = vpack.c.bf16 %v817, %v813
  %v830 = vpack.c.bf16 %v818, %v814
  %v831 = vpack.c.bf16 %v819, %v815
  %v832 = vpack.c.bf16 %v820, %v820
  %v833 = vpack.c.bf16 %v821, %v821
  %v834 = vpack.c.bf16 %v822, %v822
  %v835 = vpack.c.bf16 %v823, %v823
  %v837 = vsel %vm489, %v832, 0
  %v840 = vsel %vm489, %v833, 0
  %v843 = vsel %vm489, %v834, 0
  %v846 = vsel %vm489, %v835, 0
  %848 = vmatpush.bf16.msra.mxu0 0
  %849 = vmatpush.bf16.msra.mxu0 0
  %850 = vmatpush.bf16.msra.mxu0 0
  %851 = vmatpush.bf16.msra.mxu0 0
  %852 = vmatpush.bf16.msra.mxu0 0
  %853 = vmatpush.bf16.msra.mxu0 %v837
  %854 = vmatpush.bf16.msra.mxu0 %v828
  %855 = vmatpush.bf16.msra.mxu0 %v824
  %856 = vmatmul.bf16.gmra.mxu0 %v487
  %v857 = vpop.f32.mrf.mxu0
  %v858 = vadd.f32 0.0, %v857
  %v859 = vpop.f32.mrf.mxu0
  %860 = vdwg.mxu0
  %861 = vmatpush.bf16.msra.mxu0 0
  %862 = vmatpush.bf16.msra.mxu0 0
  %863 = vmatpush.bf16.msra.mxu0 0
  %864 = vmatpush.bf16.msra.mxu0 0
  %865 = vmatpush.bf16.msra.mxu0 0
  %866 = vmatpush.bf16.msra.mxu0 %v840
  %867 = vmatpush.bf16.msra.mxu0 %v829
  %868 = vmatpush.bf16.msra.mxu0 %v825
  %869 = vmatmul.bf16.gmra.mxu0 %v487
  %v870 = vpop.f32.mrf.mxu0
  %v871 = vadd.f32 0.0, %v870
  %v872 = vpop.f32.mrf.mxu0
  %873 = vdwg.mxu0
  %874 = vmatpush.bf16.msra.mxu0 0
  %875 = vmatpush.bf16.msra.mxu0 0
  %876 = vmatpush.bf16.msra.mxu0 0
  %877 = vmatpush.bf16.msra.mxu0 0
  %878 = vmatpush.bf16.msra.mxu0 0
  %879 = vmatpush.bf16.msra.mxu0 %v843
  %880 = vmatpush.bf16.msra.mxu0 %v830
  %881 = vmatpush.bf16.msra.mxu0 %v826
  %882 = vmatmul.bf16.gmra.mxu0 %v487
  %v883 = vpop.f32.mrf.mxu0
  %v884 = vadd.f32 0.0, %v883
  %v885 = vpop.f32.mrf.mxu0
  %886 = vdwg.mxu0
  %887 = vmatpush.bf16.msra.mxu0 0
  %888 = vmatpush.bf16.msra.mxu0 0
  %889 = vmatpush.bf16.msra.mxu0 0
  %890 = vmatpush.bf16.msra.mxu0 0
  %891 = vmatpush.bf16.msra.mxu0 0
  %892 = vmatpush.bf16.msra.mxu0 %v846
  %893 = vmatpush.bf16.msra.mxu0 %v831
  %894 = vmatpush.bf16.msra.mxu0 %v827
  %895 = vmatmul.bf16.gmra.mxu0 %v487
  %v896 = vpop.f32.mrf.mxu0
  %v897 = vadd.f32 0.0, %v896
  %v898 = vpop.f32.mrf.mxu0
  %899 = vdwg.mxu0
  %v900 = vadd.f32 %v576, %v858
  %v901 = vadd.f32 %v589, %v871
  %v902 = vadd.f32 %v602, %v884
  %v903 = vadd.f32 %v615, %v897
  %s904 = scalar_lea.vmem %s1, 96
  %v905 = vld [vmem:[%s904] sm:$0xff]
  %v906 = vld [vmem:[%s904 + $0x8] sm:$0xff]
  %v907 = vld [vmem:[%s904 + $0x10] sm:$0x11]
  %v908 = vld [vmem:[%s904 + $0x18] sm:$0x11]
  %v913 = vunpack.c.l.b16 %v905
  %v914 = vunpack.c.h.b16 %v905
  %v915 = vunpack.c.l.b16 %v906
  %v916 = vunpack.c.h.b16 %v906
  %v917 = vunpack.c.l.b16 %v907
  %v918 = vunpack.c.h.b16 %v907
  %v919 = vunpack.c.l.b16 %v908
  %v920 = vunpack.c.h.b16 %v908
  %v921 = vpack.c.b16 %v917, %v913
  %v922 = vpack.c.b16 %v918, %v914
  %v923 = vpack.c.b16 %v919, %v915
  %v924 = vpack.c.b16 %v920, %v916
  %v926 = vand.u32 %v921, %v70
  %v929 = vand.u32 %v922, %v70
  %v932 = vand.u32 %v923, %v70
  %v935 = vand.u32 %v924, %v70
  %937 = vmatpush.bf16.msra.mxu0 0
  %938 = vmatpush.bf16.msra.mxu0 0
  %939 = vmatpush.bf16.msra.mxu0 0
  %940 = vmatpush.bf16.msra.mxu0 0
  %941 = vmatpush.bf16.msra.mxu0 0
  %942 = vmatpush.bf16.msra.mxu0 0
  %943 = vmatpush.bf16.msra.mxu0 0
  %944 = vmatpush.bf16.msra.mxu0 %v926
  %945 = vmatmul.bf16.gmra.mxu0 %v59
  %v946 = vpop.f32.mrf.mxu0
  %v947 = vadd.f32 0.0, %v946
  %v948 = vpop.f32.mrf.mxu0
  %v949 = vadd.f32 0.0, %v948
  %950 = vmatmul.bf16.gmra.mxu0 %v62
  %v951 = vpop.f32.mrf.mxu0
  %v952 = vadd.f32 0.0, %v951
  %v953 = vpop.f32.mrf.mxu0
  %v954 = vadd.f32 0.0, %v953
  %955 = vmatmul.bf16.gmra.mxu0 %v65
  %v956 = vpop.f32.mrf.mxu0
  %v957 = vadd.f32 0.0, %v956
  %v958 = vpop.f32.mrf.mxu0
  %959 = vdwg.mxu0
  %960 = vmatpush.bf16.msra.mxu0 0
  %961 = vmatpush.bf16.msra.mxu0 0
  %962 = vmatpush.bf16.msra.mxu0 0
  %963 = vmatpush.bf16.msra.mxu0 0
  %964 = vmatpush.bf16.msra.mxu0 0
  %965 = vmatpush.bf16.msra.mxu0 0
  %966 = vmatpush.bf16.msra.mxu0 0
  %967 = vmatpush.bf16.msra.mxu0 %v929
  %968 = vmatmul.bf16.gmra.mxu0 %v59
  %v969 = vpop.f32.mrf.mxu0
  %v970 = vadd.f32 0.0, %v969
  %v971 = vpop.f32.mrf.mxu0
  %v972 = vadd.f32 0.0, %v971
  %973 = vmatmul.bf16.gmra.mxu0 %v62
  %v974 = vpop.f32.mrf.mxu0
  %v975 = vadd.f32 0.0, %v974
  %v976 = vpop.f32.mrf.mxu0
  %v977 = vadd.f32 0.0, %v976
  %978 = vmatmul.bf16.gmra.mxu0 %v65
  %v979 = vpop.f32.mrf.mxu0
  %v980 = vadd.f32 0.0, %v979
  %v981 = vpop.f32.mrf.mxu0
  %982 = vdwg.mxu0
  %983 = vmatpush.bf16.msra.mxu0 0
  %984 = vmatpush.bf16.msra.mxu0 0
  %985 = vmatpush.bf16.msra.mxu0 0
  %986 = vmatpush.bf16.msra.mxu0 0
  %987 = vmatpush.bf16.msra.mxu0 0
  %988 = vmatpush.bf16.msra.mxu0 0
  %989 = vmatpush.bf16.msra.mxu0 0
  %990 = vmatpush.bf16.msra.mxu0 %v932
  %991 = vmatmul.bf16.gmra.mxu0 %v59
  %v992 = vpop.f32.mrf.mxu0
  %v993 = vadd.f32 0.0, %v992
  %v994 = vpop.f32.mrf.mxu0
  %v995 = vadd.f32 0.0, %v994
  %996 = vmatmul.bf16.gmra.mxu0 %v62
  %v997 = vpop.f32.mrf.mxu0
  %v998 = vadd.f32 0.0, %v997
  %v999 = vpop.f32.mrf.mxu0
  %v1000 = vadd.f32 0.0, %v999
  %1001 = vmatmul.bf16.gmra.mxu0 %v65
  %v1002 = vpop.f32.mrf.mxu0
  %v1003 = vadd.f32 0.0, %v1002
  %v1004 = vpop.f32.mrf.mxu0
  %1005 = vdwg.mxu0
  %1006 = vmatpush.bf16.msra.mxu0 0
  %1007 = vmatpush.bf16.msra.mxu0 0
  %1008 = vmatpush.bf16.msra.mxu0 0
  %1009 = vmatpush.bf16.msra.mxu0 0
  %1010 = vmatpush.bf16.msra.mxu0 0
  %1011 = vmatpush.bf16.msra.mxu0 0
  %1012 = vmatpush.bf16.msra.mxu0 0
  %1013 = vmatpush.bf16.msra.mxu0 %v935
  %1014 = vmatmul.bf16.gmra.mxu0 %v59
  %v1015 = vpop.f32.mrf.mxu0
  %v1016 = vadd.f32 0.0, %v1015
  %v1017 = vpop.f32.mrf.mxu0
  %v1018 = vadd.f32 0.0, %v1017
  %1019 = vmatmul.bf16.gmra.mxu0 %v62
  %v1020 = vpop.f32.mrf.mxu0
  %v1021 = vadd.f32 0.0, %v1020
  %v1022 = vpop.f32.mrf.mxu0
  %v1023 = vadd.f32 0.0, %v1022
  %1024 = vmatmul.bf16.gmra.mxu0 %v65
  %v1025 = vpop.f32.mrf.mxu0
  %v1026 = vadd.f32 0.0, %v1025
  %v1027 = vpop.f32.mrf.mxu0
  %1028 = vdwg.mxu0
  %v1029 = vpack.c.bf16 %v970, %v947
  %v1030 = vpack.c.bf16 %v1016, %v993
  %v1031 = vpack.c.bf16 %v972, %v949
  %v1032 = vpack.c.bf16 %v1018, %v995
  %v1033 = vpack.c.bf16 %v975, %v952
  %v1034 = vpack.c.bf16 %v1021, %v998
  %v1035 = vpack.c.bf16 %v977, %v954
  %v1036 = vpack.c.bf16 %v1023, %v1000
  %v1037 = vpack.c.bf16 %v980, %v957
  %v1038 = vpack.c.bf16 %v1026, %v1003
  %s1039 = scalar_lea.vmem %s0, 240
  %v1040 = vld [vmem:[%s1039] sm:$0xff]
  %v1041 = vld [vmem:[%s1039 + $0x8] sm:$0xff]
  %v1042 = vld [vmem:[%s1039 + $0x10] sm:$0xff]
  %v1043 = vld [vmem:[%s1039 + $0x18] sm:$0xff]
  %v1044 = vld [vmem:[%s1039 + $0x20] sm:$0xff]
  %v1045 = vld [vmem:[%s1039 + $0x28] sm:$0xff]
  %v1046 = vld [vmem:[%s1039 + $0x30] sm:$0xff]
  %v1047 = vld [vmem:[%s1039 + $0x38] sm:$0xff]
  %v1048 = vld [vmem:[%s1039 + $0x40] sm:$0x33]
  %v1049 = vld [vmem:[%s1039 + $0x48] sm:$0x33]
  %v1050 = vunpack.c.l.bf16 %v1029
  %v1051 = vunpack.c.h.bf16 %v1029
  %v1052 = vunpack.c.l.bf16 %v1030
  %v1053 = vunpack.c.h.bf16 %v1030
  %v1054 = vunpack.c.l.bf16 %v1031
  %v1055 = vunpack.c.h.bf16 %v1031
  %v1056 = vunpack.c.l.bf16 %v1032
  %v1057 = vunpack.c.h.bf16 %v1032
  %v1058 = vunpack.c.l.bf16 %v1033
  %v1059 = vunpack.c.h.bf16 %v1033
  %v1060 = vunpack.c.l.bf16 %v1034
  %v1061 = vunpack.c.h.bf16 %v1034
  %v1062 = vunpack.c.l.bf16 %v1035
  %v1063 = vunpack.c.h.bf16 %v1035
  %v1064 = vunpack.c.l.bf16 %v1036
  %v1065 = vunpack.c.h.bf16 %v1036
  %v1066 = vunpack.c.l.bf16 %v1037
  %v1067 = vunpack.c.h.bf16 %v1037
  %v1068 = vunpack.c.l.bf16 %v1038
  %v1069 = vunpack.c.h.bf16 %v1038
  %v1070 = vunpack.c.l.bf16 %v1040
  %v1071 = vunpack.c.h.bf16 %v1040
  %v1072 = vunpack.c.l.bf16 %v1041
  %v1073 = vunpack.c.h.bf16 %v1041
  %v1074 = vunpack.c.l.bf16 %v1042
  %v1075 = vunpack.c.h.bf16 %v1042
  %v1076 = vunpack.c.l.bf16 %v1043
  %v1077 = vunpack.c.h.bf16 %v1043
  %v1078 = vunpack.c.l.bf16 %v1044
  %v1079 = vunpack.c.h.bf16 %v1044
  %v1080 = vunpack.c.l.bf16 %v1045
  %v1081 = vunpack.c.h.bf16 %v1045
  %v1082 = vunpack.c.l.bf16 %v1046
  %v1083 = vunpack.c.h.bf16 %v1046
  %v1084 = vunpack.c.l.bf16 %v1047
  %v1085 = vunpack.c.h.bf16 %v1047
  %v1086 = vunpack.c.l.bf16 %v1048
  %v1087 = vunpack.c.h.bf16 %v1048
  %v1088 = vunpack.c.l.bf16 %v1049
  %v1089 = vunpack.c.h.bf16 %v1049
  %v1090 = vmul.f32 %v1050, %v1070
  %v1091 = vmul.f32 %v1051, %v1071
  %v1092 = vmul.f32 %v1052, %v1072
  %v1093 = vmul.f32 %v1053, %v1073
  %v1094 = vmul.f32 %v1054, %v1074
  %v1095 = vmul.f32 %v1055, %v1075
  %v1096 = vmul.f32 %v1056, %v1076
  %v1097 = vmul.f32 %v1057, %v1077
  %v1098 = vmul.f32 %v1058, %v1078
  %v1099 = vmul.f32 %v1059, %v1079
  %v1100 = vmul.f32 %v1060, %v1080
  %v1101 = vmul.f32 %v1061, %v1081
  %v1102 = vmul.f32 %v1062, %v1082
  %v1103 = vmul.f32 %v1063, %v1083
  %v1104 = vmul.f32 %v1064, %v1084
  %v1105 = vmul.f32 %v1065, %v1085
  %v1106 = vmul.f32 %v1066, %v1086
  %v1107 = vmul.f32 %v1067, %v1087
  %v1108 = vmul.f32 %v1068, %v1088
  %v1109 = vmul.f32 %v1069, %v1089
  %v1110 = vpack.c.bf16 %v1094, %v1090
  %v1111 = vpack.c.bf16 %v1095, %v1091
  %v1112 = vpack.c.bf16 %v1096, %v1092
  %v1113 = vpack.c.bf16 %v1097, %v1093
  %v1114 = vpack.c.bf16 %v1102, %v1098
  %v1115 = vpack.c.bf16 %v1103, %v1099
  %v1116 = vpack.c.bf16 %v1104, %v1100
  %v1117 = vpack.c.bf16 %v1105, %v1101
  %v1118 = vpack.c.bf16 %v1106, %v1106
  %v1119 = vpack.c.bf16 %v1107, %v1107
  %v1120 = vpack.c.bf16 %v1108, %v1108
  %v1121 = vpack.c.bf16 %v1109, %v1109
  %v1123 = vsel %vm489, %v1118, 0
  %v1126 = vsel %vm489, %v1119, 0
  %v1129 = vsel %vm489, %v1120, 0
  %v1132 = vsel %vm489, %v1121, 0
  %1134 = vmatpush.bf16.msra.mxu0 0
  %1135 = vmatpush.bf16.msra.mxu0 0
  %1136 = vmatpush.bf16.msra.mxu0 0
  %1137 = vmatpush.bf16.msra.mxu0 0
  %1138 = vmatpush.bf16.msra.mxu0 0
  %1139 = vmatpush.bf16.msra.mxu0 %v1123
  %1140 = vmatpush.bf16.msra.mxu0 %v1114
  %1141 = vmatpush.bf16.msra.mxu0 %v1110
  %1142 = vmatmul.bf16.gmra.mxu0 %v487
  %v1143 = vpop.f32.mrf.mxu0
  %v1144 = vadd.f32 0.0, %v1143
  %v1145 = vpop.f32.mrf.mxu0
  %1146 = vdwg.mxu0
  %1147 = vmatpush.bf16.msra.mxu0 0
  %1148 = vmatpush.bf16.msra.mxu0 0
  %1149 = vmatpush.bf16.msra.mxu0 0
  %1150 = vmatpush.bf16.msra.mxu0 0
  %1151 = vmatpush.bf16.msra.mxu0 0
  %1152 = vmatpush.bf16.msra.mxu0 %v1126
  %1153 = vmatpush.bf16.msra.mxu0 %v1115
  %1154 = vmatpush.bf16.msra.mxu0 %v1111
  %1155 = vmatmul.bf16.gmra.mxu0 %v487
  %v1156 = vpop.f32.mrf.mxu0
  %v1157 = vadd.f32 0.0, %v1156
  %v1158 = vpop.f32.mrf.mxu0
  %1159 = vdwg.mxu0
  %1160 = vmatpush.bf16.msra.mxu0 0
  %1161 = vmatpush.bf16.msra.mxu0 0
  %1162 = vmatpush.bf16.msra.mxu0 0
  %1163 = vmatpush.bf16.msra.mxu0 0
  %1164 = vmatpush.bf16.msra.mxu0 0
  %1165 = vmatpush.bf16.msra.mxu0 %v1129
  %1166 = vmatpush.bf16.msra.mxu0 %v1116
  %1167 = vmatpush.bf16.msra.mxu0 %v1112
  %1168 = vmatmul.bf16.gmra.mxu0 %v487
  %v1169 = vpop.f32.mrf.mxu0
  %v1170 = vadd.f32 0.0, %v1169
  %v1171 = vpop.f32.mrf.mxu0
  %1172 = vdwg.mxu0
  %1173 = vmatpush.bf16.msra.mxu0 0
  %1174 = vmatpush.bf16.msra.mxu0 0
  %1175 = vmatpush.bf16.msra.mxu0 0
  %1176 = vmatpush.bf16.msra.mxu0 0
  %1177 = vmatpush.bf16.msra.mxu0 0
  %1178 = vmatpush.bf16.msra.mxu0 %v1132
  %1179 = vmatpush.bf16.msra.mxu0 %v1117
  %1180 = vmatpush.bf16.msra.mxu0 %v1113
  %1181 = vmatmul.bf16.gmra.mxu0 %v487
  %v1182 = vpop.f32.mrf.mxu0
  %v1183 = vadd.f32 0.0, %v1182
  %v1184 = vpop.f32.mrf.mxu0
  %1185 = vdwg.mxu0
  %v1186 = vadd.f32 %v900, %v1144
  %v1187 = vadd.f32 %v901, %v1157
  %v1188 = vadd.f32 %v902, %v1170
  %v1189 = vadd.f32 %v903, %v1183
  %1190 = vst [vmem:[%s4] sm:$0xff] %v1186
  %1191 = vst [vmem:[%s4 + $0x8] sm:$0xff] %v1187
  %1192 = vst [vmem:[%s4 + $0x10] sm:$0xff] %v1188
  %1193 = vst [vmem:[%s4 + $0x18] sm:$0xff] %v1189
  // Predicated region
  $region18: #{_deform_conv2d_jit.1} parent=0 // pred_check
    _
  $region19: #{_deform_conv2d_jit.1} parent=0 // pred_check_branch
    %1195 = sbr.rel (0) target = $region21
  $region20: #{_deform_conv2d_jit.1} parent=0 // pred_region
    _
  $region21: #{_deform_conv2d_jit.1} parent=0 // pred_fallthru
    _
  // Predicated region
  $region22: #{_deform_conv2d_jit.1} parent=0 // pred_check
    _
  $region23: #{_deform_conv2d_jit.1} parent=0 // pred_check_branch
    %1197 = sbr.rel (0) target = $region25
  $region24: #{_deform_conv2d_jit.1} parent=0 // pred_region
    _
  $region25: #{_deform_conv2d_jit.1} parent=0 // pred_fallthru
    _

</llo_original>
